<compile_context>
chip_gen: v6e
topology: v6e:2x2x1
jax: 0.10.0
libtpu: 0.0.40
codegen_flags: <defaults>
</compile_context>

<pallas_src>
import functools

import jax
import jax.numpy as jnp
from jax.experimental import pallas as pl
from jax.experimental.pallas import tpu as pltpu


_LANE_CANDIDATES = (8192, 4096, 2048, 1024, 512, 256, 128)
_DEFAULT_BLOCK_BYTES = 4 * 1024 * 1024  # ~4 MiB per VMEM block buffer


def _hsigmoid_kernel(x_ref, o_ref):
    x = x_ref[...]
    # relu6(1.2*x + 3) / 6  ==  clip(0.2*x + 0.5, 0, 1)   (single mul + add + clamp)
    o_ref[...] = jnp.clip(x * 0.2 + 0.5, 0.0, 1.0).astype(o_ref.dtype)


def _choose_layout(total, itemsize, block_bytes):
    """Pick (lane, rows, tile_rows, padded_total) for a lane-dense 2D slab."""
    lane = None
    for cand in _LANE_CANDIDATES:
        if total % cand == 0:
            lane = cand
            break
    if lane is None:
        lane = 128  # tail will be zero-padded up to a whole lane row
    rows = pl.cdiv(total, lane)

    # Rows per block targeting ~block_bytes per buffer; multiple of 8 (sublane).
    tile_rows = max(8, (block_bytes // (lane * itemsize)) // 8 * 8)
    if rows <= tile_rows:
        tile_rows = rows                                # one block = full array
    else:
        rows = pl.cdiv(rows, tile_rows) * tile_rows     # pad rows to a whole grid
    return lane, rows, tile_rows, rows * lane


@functools.partial(jax.jit, static_argnames=("block_bytes",))
def hsigmoid(x: jax.Array, *, block_bytes: int = _DEFAULT_BLOCK_BYTES) -> jax.Array:
    """Elementwise hsigmoid = relu6(1.2*x + 3)/6. Accepts NCHW (or any shape)."""
    orig_shape = x.shape
    total = x.size
    if total == 0:
        return x
    itemsize = jnp.dtype(x.dtype).itemsize
    lane, rows, tile_rows, padded_total = _choose_layout(total, itemsize, block_bytes)

    flat = x.reshape(-1)
    if padded_total != total:
        flat = jnp.pad(flat, (0, padded_total - total))
    x2 = flat.reshape(rows, lane)

    grid = (rows // tile_rows,)
    block = (tile_rows, lane)

    out = pl.pallas_call(
        _hsigmoid_kernel,
        out_shape=jax.ShapeDtypeStruct((rows, lane), x.dtype),
        grid=grid,
        in_specs=[pl.BlockSpec(block, lambda i: (i, 0))],
        out_specs=pl.BlockSpec(block, lambda i: (i, 0)),
        compiler_params=pltpu.CompilerParams(
            dimension_semantics=("parallel",),
            vmem_limit_bytes=32 * 1024 * 1024,
        ),
        cost_estimate=pl.CostEstimate(
            flops=3 * padded_total,
            transcendentals=0,
            bytes_accessed=2 * padded_total * itemsize,
        ),
    )(x2)

    out_flat = out.reshape(-1)
    if padded_total != total:
        out_flat = out_flat[:total]
    return out_flat.reshape(orig_shape)


if __name__ == "__main__":
    def ref_fn(x):
        # PyTorch reference semantics: relu6(1.2*x + 3) / 6
        return jnp.clip(1.2 * x + 3.0, 0.0, 6.0) / 6.0

    # Primary check: small NCHW input, as in the detector module.
    x = jax.random.normal(jax.random.PRNGKey(0), (2, 4, 16, 16), dtype=jnp.float32) * 3.0
    y = hsigmoid(x)
    jax.block_until_ready(y)
    assert y.shape == x.shape and y.dtype == x.dtype
    assert jnp.max(jnp.abs(y - ref_fn(x))) < 2e-6

    # Exercise the multi-block (pipelined, grid > 1) path with a tiny block budget.
    x2 = jax.random.normal(jax.random.PRNGKey(1), (32, 8, 32, 32), dtype=jnp.float32) * 3.0
    y2 = hsigmoid(x2, block_bytes=64 * 1024)
    jax.block_until_ready(y2)
    assert jnp.max(jnp.abs(y2 - ref_fn(x2))) < 2e-6

    # Exercise the padded / non-128-divisible path (N*C*H*W not a multiple of 128).
    x3 = jax.random.normal(jax.random.PRNGKey(2), (5, 7, 24, 24), dtype=jnp.float32) * 3.0
    y3 = hsigmoid(x3, block_bytes=16 * 1024)
    jax.block_until_ready(y3)
    assert y3.shape == x3.shape
    assert jnp.max(jnp.abs(y3 - ref_fn(x3))) < 2e-6

    # bf16 path: no f32 upcast in the wrapper (halves HBM traffic for bf16 models).
    xb = jax.random.normal(jax.random.PRNGKey(3), (2, 4, 16, 16), dtype=jnp.bfloat16) * 3.0
    yb = hsigmoid(xb)
    jax.block_until_ready(yb)
    assert yb.dtype == jnp.bfloat16
    assert jnp.max(jnp.abs(yb.astype(jnp.float32) - ref_fn(xb.astype(jnp.float32)))) < 2e-2

    print("KERNEL_OK")
</pallas_src>

<mosaic_0001>
module attributes {stable_mosaic.version = 11 : i64} {
  func.func @_hsigmoid_kernel(%arg0: i32, %arg1: memref<1x2048xf32, #tpu.memory_space<vmem>>, %arg2: memref<1x2048xf32, #tpu.memory_space<vmem>>) attributes {dimension_semantics = [#tpu.dimension_semantics<parallel>], iteration_bounds = array<i64: 1>, scalar_prefetch = 0 : i64, scratch_operands = 0 : i64, tpu.core_type = #tpu.core_type<tc>, window_params = [{transform_indices = @transform_0, window_bounds = array<i64: 1, 2048>}, {transform_indices = @transform_1, window_bounds = array<i64: 1, 2048>}]} {
    %c0 = arith.constant 0 : index
    %c0_0 = arith.constant 0 : index
    %0 = vector.load %arg1[%c0, %c0_0] : memref<1x2048xf32, #tpu.memory_space<vmem>>, vector<1x2048xf32>
    %cst = arith.constant 2.000000e-01 : f32
    %1 = vector.broadcast %cst : f32 to vector<1x2048xf32>
    %2 = arith.mulf %0, %1 : vector<1x2048xf32>
    %cst_1 = arith.constant 5.000000e-01 : f32
    %3 = vector.broadcast %cst_1 : f32 to vector<1x2048xf32>
    %4 = arith.addf %2, %3 : vector<1x2048xf32>
    %cst_2 = arith.constant 0.000000e+00 : f32
    %cst_3 = arith.constant 1.000000e+00 : f32
    %5 = vector.broadcast %cst_2 : f32 to vector<1x2048xf32>
    %6 = arith.maximumf %5, %4 : vector<1x2048xf32>
    %7 = vector.broadcast %cst_3 : f32 to vector<1x2048xf32>
    %8 = arith.minimumf %7, %6 : vector<1x2048xf32>
    %c0_4 = arith.constant 0 : index
    %c0_5 = arith.constant 0 : index
    %9 = vector.load %arg2[%c0_4, %c0_5] : memref<1x2048xf32, #tpu.memory_space<vmem>>, vector<1x2048xf32>
    tpu.vector_store %arg2[%c0_4, %c0_5], %8 {strides = array<i32>} : memref<1x2048xf32, #tpu.memory_space<vmem>>, vector<1x2048xf32>,
    return
  }
  func.func @transform_0(%arg0: i32) -> (i32, i32) {
    %c0_i32 = arith.constant 0 : i32
    %c0_i32_0 = arith.constant 0 : i32
    return %arg0, %c0_i32 : i32, i32
  }
  func.func @transform_1(%arg0: i32) -> (i32, i32) {
    %c0_i32 = arith.constant 0 : i32
    %c0_i32_0 = arith.constant 0 : i32
    return %arg0, %c0_i32 : i32, i32
  }
}

</mosaic_0001>

<llo_original>
// kernel: hsigmoid.1
$region0: #{hsigmoid.1}
  #allocation0 [shape = 'u32[]', space=smem, size = 0x4, offset = 0x4, fixed_abs, tag = 'smem constant byte address 0x4 - core index']
  #allocation1 [shape = 'u32[144,128]{1,0:T(1,128)}', space=vmem, size = 0x12000, scoped, tag = 'internal scratch']
  %s0 = inlined_call_operand.vmem [shape: f32[1,2048], index: 0, kind: input, shape index: {}]
  %s1 = inlined_call_operand.vmem [shape: f32[1,2048], index: 1, kind: output, shape index: {}]
  %s2 = sld [smem:[#allocation0]]
  $region14: #{hsigmoid.1} parent=0
    _
  %s4 = ssub.s32 1, %s2
  %s5 = scalar_select 0, %s4, %s2
  // Predicated region
  $region2: #{hsigmoid.1} parent=0 // pred_check
    _
  $region3: #{hsigmoid.1} parent=0 // pred_check_branch
    %7 = sbr.rel (0) target = $region5
  $region4: #{hsigmoid.1} parent=0 // pred_region
    _
  $region5: #{hsigmoid.1} parent=0 // pred_fallthru
    _
  %v8 = vld [vmem:[%s0] sm:$0xff]
  %v9 = vld [vmem:[%s0 + $0x8] sm:$0xff]
  %v10 = vmul.f32 %v8, 0.2
  %v11 = vmul.f32 %v9, 0.2
  %v12 = vadd.f32 %v10, 0.5
  %v13 = vadd.f32 %v11, 0.5
  %v14 = vmax.f32 %v12, 0.0
  %v15 = vmax.f32 %v13, 0.0
  %v16 = vmin.f32 %v14, 1.0
  %v17 = vmin.f32 %v15, 1.0
  %18 = vst [vmem:[%s1] sm:$0xff] %v16
  %19 = vst [vmem:[%s1 + $0x8] sm:$0xff] %v17
  // Predicated region
  $region6: #{hsigmoid.1} parent=0 // pred_check
    _
  $region7: #{hsigmoid.1} parent=0 // pred_check_branch
    %21 = sbr.rel (0) target = $region9
  $region8: #{hsigmoid.1} parent=0 // pred_region
    _
  $region9: #{hsigmoid.1} parent=0 // pred_fallthru
    _
  // Predicated region
  $region10: #{hsigmoid.1} parent=0 // pred_check
    _
  $region11: #{hsigmoid.1} parent=0 // pred_check_branch
    %23 = sbr.rel (0) target = $region13
  $region12: #{hsigmoid.1} parent=0 // pred_region
    _
  $region13: #{hsigmoid.1} parent=0 // pred_fallthru
    _

</llo_original>
